<compile_context>
chip_gen: v5e
topology: v5e:2x2
jax: 0.10.0
libtpu: 0.0.40
codegen_flags: <defaults>
</compile_context>

<pallas_src>
import functools
import math

import jax
import jax.numpy as jnp
from jax.experimental import pallas as pl
from jax.experimental.pallas import tpu as pltpu


# ----------------------------- Pallas kernel -------------------------------

def _moe_lora_kernel(x_ref, route_ref,
                     up_wt_ref, gate_wt_ref, down_wt_ref,
                     ugA_ref, upB_ref, gateB_ref,
                     downA_ref, downB_ref,
                     out_ref,
                     base_up_sc, base_gate_sc, hid_acc_sc, out_acc_sc,
                     *, lora_alpha, lora_rank):
    e = pl.program_id(1)
    num_e = pl.num_programs(1)

    x = x_ref[...]                                    # (tT, D)
    cdt = x.dtype                                     # MXU input dtype (bf16 in prod)

    # ---- expert-invariant work: once per token tile -------------------------
    @pl.when(e == 0)
    def _init():
        base_up_sc[...] = jnp.dot(x, up_wt_ref[...],
                                  preferred_element_type=jnp.float32)
        base_gate_sc[...] = jnp.dot(x, gate_wt_ref[...],
                                    preferred_element_type=jnp.float32)
        hid_acc_sc[...] = jnp.zeros_like(hid_acc_sc)
        out_acc_sc[...] = jnp.zeros_like(out_acc_sc)

    # ---- per-expert rank-R LoRA corrections (activation side) ---------------
    # Single fused contraction-D GEMM for both up and gate A-factors.
    xa = jnp.dot(x, ugA_ref[...], preferred_element_type=jnp.float32)    # (tT, 2R)
    xu = xa[:, :lora_rank].astype(cdt)                                   # (tT, R)
    xg = xa[:, lora_rank:].astype(cdt)                                   # (tT, R)

    up_e = base_up_sc[...] + lora_alpha * jnp.dot(
        xu, upB_ref[...], preferred_element_type=jnp.float32)            # (tT, H)
    gate_e = base_gate_sc[...] + lora_alpha * jnp.dot(
        xg, gateB_ref[...], preferred_element_type=jnp.float32)          # (tT, H)

    hidden_e = jax.nn.silu(up_e) * gate_e             # silu(up) * gate, f32

    # routing weight of expert e for each token in the tile (0 if not selected)
    e_ids = jax.lax.broadcasted_iota(jnp.int32, route_ref.shape, 1)
    w = jnp.sum(jnp.where(e_ids == e, route_ref[...].astype(jnp.float32), 0.0),
                axis=1, keepdims=True)                # (tT, 1)
    wh = w * hidden_e                                 # (tT, H), f32

    hid_acc_sc[...] += wh                             # feeds single base down GEMM

    # rank-R down-projection LoRA term, accumulated in f32
    hd = jnp.dot(wh.astype(cdt), downA_ref[...],
                 preferred_element_type=jnp.float32)  # (tT, R)
    out_acc_sc[...] += lora_alpha * jnp.dot(
        hd.astype(cdt), downB_ref[...], preferred_element_type=jnp.float32)

    # ---- finalize: one base down GEMM + LoRA accumulator, one store ---------
    @pl.when(e == num_e - 1)
    def _finalize():
        base_down = jnp.dot(hid_acc_sc[...].astype(cdt), down_wt_ref[...],
                            preferred_element_type=jnp.float32)
        out_ref[...] = (base_down + out_acc_sc[...]).astype(out_ref.dtype)


# ------------------------------- Wrapper ------------------------------------

def _pick_token_tile(T, requested=None):
    if requested is not None:
        assert T % requested == 0, (T, requested)
        return requested
    for cand in (512, 256, 128, 64, 32, 16, 8):
        if T % cand == 0:
            return cand
    return T


def moe_lora_forward(x, router_w,
                     up_w, gate_w, down_w,
                     up_A, up_B, gate_A, gate_B, down_A, down_B,
                     *, num_experts_per_tok, lora_alpha, token_tile=None):
    B, S, D = x.shape
    E, R, _ = up_A.shape
    H = up_w.shape[0]
    T = B * S
    xf = x.reshape(T, D)

    tT = _pick_token_tile(T, token_tile)
    n_tok_tiles = T // tT

    # ---- router glue (plain JAX): gate logits, top-k, softmax over dim=1 ----
    # Faithful to the reference (softmax over the *sequence* axis, as
    # F.softmax(weights, dim=1) does on the 3-D top-k output).
    logits = (xf @ router_w.T).reshape(B, S, E)
    wvals, sel = jax.lax.top_k(logits, num_experts_per_tok)               # (B,S,K)
    wvals = jax.nn.softmax(wvals.astype(jnp.float32), axis=1).astype(x.dtype)
    route = jnp.sum(jax.nn.one_hot(sel, E, dtype=x.dtype) * wvals[..., None],
                    axis=2).reshape(T, E)                                 # dense (T,E)

    # ---- one-time layout plumbing: in x out layouts for natural contraction -
    up_wt, gate_wt, down_wt = up_w.T, gate_w.T, down_w.T                  # (D,H),(D,H),(H,D)
    # up/gate A-factors concatenated along rank -> one fused A-side GEMM/expert.
    ugA_t = jnp.swapaxes(jnp.concatenate([up_A, gate_A], axis=1), 1, 2)   # (E, D, 2R)
    upB_t   = jnp.swapaxes(up_B,   1, 2)   # (E, R, H)
    gateB_t = jnp.swapaxes(gate_B, 1, 2)   # (E, R, H)
    downA_t = jnp.swapaxes(down_A, 1, 2)   # (E, H, R)
    downB_t = jnp.swapaxes(down_B, 1, 2)   # (E, R, D)

    kernel = functools.partial(_moe_lora_kernel,
                               lora_alpha=lora_alpha, lora_rank=R)

    grid_spec = pltpu.PrefetchScalarGridSpec(
        num_scalar_prefetch=0,
        grid=(n_tok_tiles, E),                       # tokens parallel, experts inner
        in_specs=[
            pl.BlockSpec((tT, D),       lambda t, e: (t, 0)),     # x tokens
            pl.BlockSpec((tT, E),       lambda t, e: (t, 0)),     # dense routing weights
            pl.BlockSpec((D, H),        lambda t, e: (0, 0)),     # up_w^T   (loop invariant)
            pl.BlockSpec((D, H),        lambda t, e: (0, 0)),     # gate_w^T
            pl.BlockSpec((H, D),        lambda t, e: (0, 0)),     # down_w^T
            pl.BlockSpec((None, D, 2 * R), lambda t, e: (e, 0, 0)),  # [upA|gateA]^T
            pl.BlockSpec((None, R, H),     lambda t, e: (e, 0, 0)),  # up_B^T
            pl.BlockSpec((None, R, H),     lambda t, e: (e, 0, 0)),  # gate_B^T
            pl.BlockSpec((None, H, R),     lambda t, e: (e, 0, 0)),  # down_A^T
            pl.BlockSpec((None, R, D),     lambda t, e: (e, 0, 0)),  # down_B^T
        ],
        out_specs=pl.BlockSpec((tT, D), lambda t, e: (t, 0)),
        scratch_shapes=[
            pltpu.VMEM((tT, H), jnp.float32),   # base up  (expert invariant)
            pltpu.VMEM((tT, H), jnp.float32),   # base gate (expert invariant)
            pltpu.VMEM((tT, H), jnp.float32),   # sum_e w_e * hidden_e
            pltpu.VMEM((tT, D), jnp.float32),   # f32 output (down-LoRA) accumulator
        ],
    )

    out = pl.pallas_call(
        kernel,
        grid_spec=grid_spec,
        out_shape=jax.ShapeDtypeStruct((T, D), x.dtype),
        compiler_params=pltpu.CompilerParams(
            dimension_semantics=("parallel", "arbitrary")),
    )(xf, route, up_wt, gate_wt, down_wt,
      ugA_t, upB_t, gateB_t, downA_t, downB_t)

    return out.reshape(B, S, D)


# --------------------------- Pure-JAX reference ------------------------------

def reference_forward(x, router_w, up_w, gate_w, down_w,
                      up_A, up_B, gate_A, gate_B, down_A, down_B,
                      *, num_experts_per_tok, lora_alpha):
    B, S, D = x.shape
    E = up_A.shape[0]
    hp = jax.lax.Precision.HIGHEST
    logits = jnp.einsum("bsd,ed->bse", x, router_w, precision=hp)
    wvals, sel = jax.lax.top_k(logits, num_experts_per_tok)
    wvals = jax.nn.softmax(wvals.astype(jnp.float32), axis=1).astype(x.dtype)
    out = jnp.zeros_like(x)
    for e in range(E):
        uw = up_w   + lora_alpha * jnp.matmul(up_B[e],   up_A[e],   precision=hp)
        gw = gate_w + lora_alpha * jnp.matmul(gate_B[e], gate_A[e], precision=hp)
        dw = down_w + lora_alpha * jnp.matmul(down_B[e], down_A[e], precision=hp)
        h = jax.nn.silu(jnp.einsum("bsd,hd->bsh", x, uw, precision=hp))
        h = h * jnp.einsum("bsd,hd->bsh", x, gw, precision=hp)
        y = jnp.einsum("bsh,dh->bsd", h, dw, precision=hp)
        we = jnp.sum(jnp.where(sel == e, wvals, 0.0), axis=-1)   # (B,S)
        out = out + we[..., None] * y
    return out


# --------------------------------- Main --------------------------------------

if __name__ == "__main__":
    # Small shapes consistent with the module.
    B, S = 2, 8                 # batch, seq
    D, H = 32, 64               # in_dim, hidden_dim
    E, K = 4, 2                 # num_experts, num_experts_per_tok
    R = 4                       # lora_rank
    LORA_ALPHA = 0.5

    key = jax.random.PRNGKey(0)
    keys = jax.random.split(key, 12)

    dtype = jnp.float32
    x = jax.random.normal(keys[0], (B, S, D), dtype)

    # Base (frozen) FFN weights + router, torch [out, in] layout.
    up_w     = jax.random.normal(keys[1], (H, D), dtype) / math.sqrt(D)
    gate_w   = jax.random.normal(keys[2], (H, D), dtype) / math.sqrt(D)
    down_w   = jax.random.normal(keys[3], (D, H), dtype) / math.sqrt(H)
    router_w = jax.random.normal(keys[4], (E, D), dtype) / math.sqrt(D)

    # LoRA params. A ~ kaiming-uniform-ish; B is zero-initialized in the
    # module's __init__, but here we use small non-zero values so the LoRA
    # path is actually exercised numerically.
    bound_a = 1.0 / math.sqrt(R * D)
    up_A   = jax.random.uniform(keys[5],  (E, R, D), dtype, -bound_a, bound_a)
    gate_A = jax.random.uniform(keys[6],  (E, R, D), dtype, -bound_a, bound_a)
    down_A = jax.random.uniform(keys[7],  (E, R, H), dtype, -bound_a, bound_a)
    up_B   = 0.1 * jax.random.normal(keys[8],  (E, H, R), dtype)
    gate_B = 0.1 * jax.random.normal(keys[9],  (E, H, R), dtype)
    down_B = 0.1 * jax.random.normal(keys[10], (E, D, R), dtype)

    out = moe_lora_forward(
        x, router_w, up_w, gate_w, down_w,
        up_A, up_B, gate_A, gate_B, down_A, down_B,
        num_experts_per_tok=K, lora_alpha=LORA_ALPHA,
        token_tile=8)          # 2 token tiles -> exercises the parallel axis
    out = jax.block_until_ready(out)

    ref = reference_forward(
        x, router_w, up_w, gate_w, down_w,
        up_A, up_B, gate_A, gate_B, down_A, down_B,
        num_experts_per_tok=K, lora_alpha=LORA_ALPHA)
    ref = jax.block_until_ready(ref)

    assert out.shape == (B, S, D)
    assert jnp.allclose(out, ref, atol=2e-2, rtol=2e-2), (
        float(jnp.max(jnp.abs(out - ref))))

    print("KERNEL_OK")
</pallas_src>

<mosaic_0001>
module attributes {stable_mosaic.version = 11 : i64} {
  func.func @_moe_lora_kernel(%arg0: i32, %arg1: i32, %arg2: memref<8x32xf32, #tpu.memory_space<vmem>>, %arg3: memref<8x4xf32, #tpu.memory_space<vmem>>, %arg4: memref<32x64xf32, #tpu.memory_space<vmem>>, %arg5: memref<32x64xf32, #tpu.memory_space<vmem>>, %arg6: memref<64x32xf32, #tpu.memory_space<vmem>>, %arg7: memref<1x32x8xf32, #tpu.memory_space<vmem>>, %arg8: memref<1x4x64xf32, #tpu.memory_space<vmem>>, %arg9: memref<1x4x64xf32, #tpu.memory_space<vmem>>, %arg10: memref<1x64x4xf32, #tpu.memory_space<vmem>>, %arg11: memref<1x4x32xf32, #tpu.memory_space<vmem>>, %arg12: memref<8x32xf32, #tpu.memory_space<vmem>>, %arg13: memref<8x64xf32, #tpu.memory_space<vmem>>, %arg14: memref<8x64xf32, #tpu.memory_space<vmem>>, %arg15: memref<8x64xf32, #tpu.memory_space<vmem>>, %arg16: memref<8x32xf32, #tpu.memory_space<vmem>>) attributes {dimension_semantics = [#tpu.dimension_semantics<parallel>, #tpu.dimension_semantics<arbitrary>], iteration_bounds = array<i64: 2, 4>, scalar_prefetch = 0 : i64, scratch_operands = 4 : i64, tpu.core_type = #tpu.core_type<tc>, window_params = [{transform_indices = @transform_0, window_bounds = array<i64: 8, 32>}, {transform_indices = @transform_1, window_bounds = array<i64: 8, 4>}, {pipeline_mode = #tpu.pipeline_mode<synchronous>, transform_indices = @transform_2, window_bounds = array<i64: 32, 64>}, {pipeline_mode = #tpu.pipeline_mode<synchronous>, transform_indices = @transform_3, window_bounds = array<i64: 32, 64>}, {pipeline_mode = #tpu.pipeline_mode<synchronous>, transform_indices = @transform_4, window_bounds = array<i64: 64, 32>}, {transform_indices = @transform_5, window_bounds = array<i64: 1, 32, 8>}, {transform_indices = @transform_6, window_bounds = array<i64: 1, 4, 64>}, {transform_indices = @transform_7, window_bounds = array<i64: 1, 4, 64>}, {transform_indices = @transform_8, window_bounds = array<i64: 1, 64, 4>}, {transform_indices = @transform_9, window_bounds = array<i64: 1, 4, 32>}, {transform_indices = @transform_10, window_bounds = array<i64: 8, 32>}]} {
    %c0 = arith.constant 0 : index
    %c0_0 = arith.constant 0 : index
    %0 = vector.load %arg2[%c0, %c0_0] : memref<8x32xf32, #tpu.memory_space<vmem>>, vector<8x32xf32>
    %c0_i32 = arith.constant 0 : i32
    %1 = arith.cmpi eq, %arg1, %c0_i32 : i32
    %2 = arith.extui %1 : i1 to i32
    %c0_i32_1 = arith.constant 0 : i32
    %3 = arith.cmpi ne, %2, %c0_i32_1 : i32
    scf.if %3 {
      %c0_42 = arith.constant 0 : index
      %c0_43 = arith.constant 0 : index
      %57 = vector.load %arg4[%c0_42, %c0_43] : memref<32x64xf32, #tpu.memory_space<vmem>>, vector<32x64xf32>
      %cst_44 = arith.constant dense<0.000000e+00> : vector<8x64xf32>
      %58 = tpu.matmul %0, %57, %cst_44 {dimension_numbers = #tpu.dot_dimension_numbers<[1], [0], [0], [1], [0, 0, 1, 1], [], []>} : vector<8x32xf32>, vector<32x64xf32>, vector<8x64xf32> -> vector<8x64xf32>
      %c0_45 = arith.constant 0 : index
      %c0_46 = arith.constant 0 : index
      %59 = vector.load %arg13[%c0_45, %c0_46] : memref<8x64xf32, #tpu.memory_space<vmem>>, vector<8x64xf32>
      tpu.vector_store %arg13[%c0_45, %c0_46], %58 {strides = array<i32>} : memref<8x64xf32, #tpu.memory_space<vmem>>, vector<8x64xf32>,
      %c0_47 = arith.constant 0 : index
      %c0_48 = arith.constant 0 : index
      %60 = vector.load %arg5[%c0_47, %c0_48] : memref<32x64xf32, #tpu.memory_space<vmem>>, vector<32x64xf32>
      %cst_49 = arith.constant dense<0.000000e+00> : vector<8x64xf32>
      %61 = tpu.matmul %0, %60, %cst_49 {dimension_numbers = #tpu.dot_dimension_numbers<[1], [0], [0], [1], [0, 0, 1, 1], [], []>} : vector<8x32xf32>, vector<32x64xf32>, vector<8x64xf32> -> vector<8x64xf32>
      %c0_50 = arith.constant 0 : index
      %c0_51 = arith.constant 0 : index
      %62 = vector.load %arg14[%c0_50, %c0_51] : memref<8x64xf32, #tpu.memory_space<vmem>>, vector<8x64xf32>
      tpu.vector_store %arg14[%c0_50, %c0_51], %61 {strides = array<i32>} : memref<8x64xf32, #tpu.memory_space<vmem>>, vector<8x64xf32>,
      %cst_52 = arith.constant 0.000000e+00 : f32
      %63 = vector.broadcast %cst_52 : f32 to vector<8x64xf32>
      %c0_53 = arith.constant 0 : index
      %c0_54 = arith.constant 0 : index
      %64 = vector.load %arg15[%c0_53, %c0_54] : memref<8x64xf32, #tpu.memory_space<vmem>>, vector<8x64xf32>
      tpu.vector_store %arg15[%c0_53, %c0_54], %63 {strides = array<i32>} : memref<8x64xf32, #tpu.memory_space<vmem>>, vector<8x64xf32>,
      %cst_55 = arith.constant 0.000000e+00 : f32
      %65 = vector.broadcast %cst_55 : f32 to vector<8x32xf32>
      %c0_56 = arith.constant 0 : index
      %c0_57 = arith.constant 0 : index
      %66 = vector.load %arg16[%c0_56, %c0_57] : memref<8x32xf32, #tpu.memory_space<vmem>>, vector<8x32xf32>
      tpu.vector_store %arg16[%c0_56, %c0_57], %65 {strides = array<i32>} : memref<8x32xf32, #tpu.memory_space<vmem>>, vector<8x32xf32>,
    } else {
    }
    %c0_2 = arith.constant 0 : index
    %c0_3 = arith.constant 0 : index
    %c0_4 = arith.constant 0 : index
    %4 = vector.load %arg7[%c0_2, %c0_3, %c0_4] : memref<1x32x8xf32, #tpu.memory_space<vmem>>, vector<1x32x8xf32>
    %5 = vector.shape_cast %4 : vector<1x32x8xf32> to vector<32x8xf32>
    %cst = arith.constant dense<0.000000e+00> : vector<8x8xf32>
    %6 = tpu.matmul %0, %5, %cst {dimension_numbers = #tpu.dot_dimension_numbers<[1], [0], [0], [1], [0, 0, 1, 1], [], []>} : vector<8x32xf32>, vector<32x8xf32>, vector<8x8xf32> -> vector<8x8xf32>
    %7 = vector.extract_strided_slice %6 {offsets = [0, 0], sizes = [8, 4], strides = [1, 1]} : vector<8x8xf32> to vector<8x4xf32>
    %8 = vector.extract_strided_slice %6 {offsets = [0, 4], sizes = [8, 4], strides = [1, 1]} : vector<8x8xf32> to vector<8x4xf32>
    %c0_5 = arith.constant 0 : index
    %c0_6 = arith.constant 0 : index
    %9 = vector.load %arg13[%c0_5, %c0_6] : memref<8x64xf32, #tpu.memory_space<vmem>>, vector<8x64xf32>
    %c0_7 = arith.constant 0 : index
    %c0_8 = arith.constant 0 : index
    %c0_9 = arith.constant 0 : index
    %10 = vector.load %arg8[%c0_7, %c0_8, %c0_9] : memref<1x4x64xf32, #tpu.memory_space<vmem>>, vector<1x4x64xf32>
    %11 = vector.shape_cast %10 : vector<1x4x64xf32> to vector<4x64xf32>
    %cst_10 = arith.constant dense<0.000000e+00> : vector<8x64xf32>
    %12 = tpu.matmul %7, %11, %cst_10 {dimension_numbers = #tpu.dot_dimension_numbers<[1], [0], [0], [1], [0, 0, 1, 1], [], []>} : vector<8x4xf32>, vector<4x64xf32>, vector<8x64xf32> -> vector<8x64xf32>
    %cst_11 = arith.constant 5.000000e-01 : f32
    %13 = vector.broadcast %cst_11 : f32 to vector<8x64xf32>
    %14 = arith.mulf %13, %12 : vector<8x64xf32>
    %15 = arith.addf %9, %14 : vector<8x64xf32>
    %c0_12 = arith.constant 0 : index
    %c0_13 = arith.constant 0 : index
    %16 = vector.load %arg14[%c0_12, %c0_13] : memref<8x64xf32, #tpu.memory_space<vmem>>, vector<8x64xf32>
    %c0_14 = arith.constant 0 : index
    %c0_15 = arith.constant 0 : index
    %c0_16 = arith.constant 0 : index
    %17 = vector.load %arg9[%c0_14, %c0_15, %c0_16] : memref<1x4x64xf32, #tpu.memory_space<vmem>>, vector<1x4x64xf32>
    %18 = vector.shape_cast %17 : vector<1x4x64xf32> to vector<4x64xf32>
    %cst_17 = arith.constant dense<0.000000e+00> : vector<8x64xf32>
    %19 = tpu.matmul %8, %18, %cst_17 {dimension_numbers = #tpu.dot_dimension_numbers<[1], [0], [0], [1], [0, 0, 1, 1], [], []>} : vector<8x4xf32>, vector<4x64xf32>, vector<8x64xf32> -> vector<8x64xf32>
    %cst_18 = arith.constant 5.000000e-01 : f32
    %20 = vector.broadcast %cst_18 : f32 to vector<8x64xf32>
    %21 = arith.mulf %20, %19 : vector<8x64xf32>
    %22 = arith.addf %16, %21 : vector<8x64xf32>
    %23 = arith.negf %15 : vector<8x64xf32>
    %24 = math.exp %23 : vector<8x64xf32>
    %cst_19 = arith.constant 1.000000e+00 : f32
    %25 = vector.broadcast %cst_19 : f32 to vector<8x64xf32>
    %26 = arith.addf %25, %24 : vector<8x64xf32>
    %27 = arith.divf %25, %26 : vector<8x64xf32>
    %28 = arith.mulf %15, %27 : vector<8x64xf32>
    %29 = arith.mulf %28, %22 : vector<8x64xf32>
    %30 = tpu.iota {dimensions = array<i32: 1>} : vector<8x4xi32>
    %31 = vector.broadcast %arg1 : i32 to vector<8x4xi32>
    %32 = arith.cmpi eq, %30, %31 : vector<8x4xi32>
    %c0_20 = arith.constant 0 : index
    %c0_21 = arith.constant 0 : index
    %33 = vector.load %arg3[%c0_20, %c0_21] : memref<8x4xf32, #tpu.memory_space<vmem>>, vector<8x4xf32>
    %cst_22 = arith.constant 0.000000e+00 : f32
    %34 = vector.broadcast %cst_22 : f32 to vector<8x4xf32>
    %35 = arith.select %32, %33, %34 : vector<8x4xi1>, vector<8x4xf32>
    %cst_23 = arith.constant dense<0.000000e+00> : vector<8xf32>
    %36 = vector.multi_reduction <add>, %35, %cst_23 [1] : vector<8x4xf32> to vector<8xf32>
    %37 = vector.shape_cast %36 : vector<8xf32> to vector<8x1xf32>
    %38 = vector.broadcast %37 : vector<8x1xf32> to vector<8x64xf32>
    %39 = arith.mulf %38, %29 : vector<8x64xf32>
    %c0_24 = arith.constant 0 : index
    %c0_25 = arith.constant 0 : index
    %40 = vector.load %arg15[%c0_24, %c0_25] : memref<8x64xf32, #tpu.memory_space<vmem>>, vector<8x64xf32>
    %41 = arith.addf %40, %39 : vector<8x64xf32>
    %c0_26 = arith.constant 0 : index
    %c0_27 = arith.constant 0 : index
    %42 = vector.load %arg15[%c0_26, %c0_27] : memref<8x64xf32, #tpu.memory_space<vmem>>, vector<8x64xf32>
    tpu.vector_store %arg15[%c0_26, %c0_27], %41 {strides = array<i32>} : memref<8x64xf32, #tpu.memory_space<vmem>>, vector<8x64xf32>,
    %c0_28 = arith.constant 0 : index
    %c0_29 = arith.constant 0 : index
    %c0_30 = arith.constant 0 : index
    %43 = vector.load %arg10[%c0_28, %c0_29, %c0_30] : memref<1x64x4xf32, #tpu.memory_space<vmem>>, vector<1x64x4xf32>
    %44 = vector.shape_cast %43 : vector<1x64x4xf32> to vector<64x4xf32>
    %cst_31 = arith.constant dense<0.000000e+00> : vector<8x4xf32>
    %45 = tpu.matmul %39, %44, %cst_31 {dimension_numbers = #tpu.dot_dimension_numbers<[1], [0], [0], [1], [0, 0, 1, 1], [], []>} : vector<8x64xf32>, vector<64x4xf32>, vector<8x4xf32> -> vector<8x4xf32>
    %c0_32 = arith.constant 0 : index
    %c0_33 = arith.constant 0 : index
    %46 = vector.load %arg16[%c0_32, %c0_33] : memref<8x32xf32, #tpu.memory_space<vmem>>, vector<8x32xf32>
    %c0_34 = arith.constant 0 : index
    %c0_35 = arith.constant 0 : index
    %c0_36 = arith.constant 0 : index
    %47 = vector.load %arg11[%c0_34, %c0_35, %c0_36] : memref<1x4x32xf32, #tpu.memory_space<vmem>>, vector<1x4x32xf32>
    %48 = vector.shape_cast %47 : vector<1x4x32xf32> to vector<4x32xf32>
    %cst_37 = arith.constant dense<0.000000e+00> : vector<8x32xf32>
    %49 = tpu.matmul %45, %48, %cst_37 {dimension_numbers = #tpu.dot_dimension_numbers<[1], [0], [0], [1], [0, 0, 1, 1], [], []>} : vector<8x4xf32>, vector<4x32xf32>, vector<8x32xf32> -> vector<8x32xf32>
    %cst_38 = arith.constant 5.000000e-01 : f32
    %50 = vector.broadcast %cst_38 : f32 to vector<8x32xf32>
    %51 = arith.mulf %50, %49 : vector<8x32xf32>
    %52 = arith.addf %46, %51 : vector<8x32xf32>
    %c0_39 = arith.constant 0 : index
    %c0_40 = arith.constant 0 : index
    %53 = vector.load %arg16[%c0_39, %c0_40] : memref<8x32xf32, #tpu.memory_space<vmem>>, vector<8x32xf32>
    tpu.vector_store %arg16[%c0_39, %c0_40], %52 {strides = array<i32>} : memref<8x32xf32, #tpu.memory_space<vmem>>, vector<8x32xf32>,
    %c3_i32 = arith.constant 3 : i32
    %54 = arith.cmpi eq, %arg1, %c3_i32 : i32
    %55 = arith.extui %54 : i1 to i32
    %c0_i32_41 = arith.constant 0 : i32
    %56 = arith.cmpi ne, %55, %c0_i32_41 : i32
    scf.if %56 {
      %c0_42 = arith.constant 0 : index
      %c0_43 = arith.constant 0 : index
      %57 = vector.load %arg15[%c0_42, %c0_43] : memref<8x64xf32, #tpu.memory_space<vmem>>, vector<8x64xf32>
      %c0_44 = arith.constant 0 : index
      %c0_45 = arith.constant 0 : index
      %58 = vector.load %arg6[%c0_44, %c0_45] : memref<64x32xf32, #tpu.memory_space<vmem>>, vector<64x32xf32>
      %cst_46 = arith.constant dense<0.000000e+00> : vector<8x32xf32>
      %59 = tpu.matmul %57, %58, %cst_46 {dimension_numbers = #tpu.dot_dimension_numbers<[1], [0], [0], [1], [0, 0, 1, 1], [], []>} : vector<8x64xf32>, vector<64x32xf32>, vector<8x32xf32> -> vector<8x32xf32>
      %c0_47 = arith.constant 0 : index
      %c0_48 = arith.constant 0 : index
      %60 = vector.load %arg16[%c0_47, %c0_48] : memref<8x32xf32, #tpu.memory_space<vmem>>, vector<8x32xf32>
      %61 = arith.addf %59, %60 : vector<8x32xf32>
      %c0_49 = arith.constant 0 : index
      %c0_50 = arith.constant 0 : index
      %62 = vector.load %arg12[%c0_49, %c0_50] : memref<8x32xf32, #tpu.memory_space<vmem>>, vector<8x32xf32>
      tpu.vector_store %arg12[%c0_49, %c0_50], %61 {strides = array<i32>} : memref<8x32xf32, #tpu.memory_space<vmem>>, vector<8x32xf32>,
    } else {
    }
    return
  }
  func.func @transform_0(%arg0: i32, %arg1: i32) -> (i32, i32) {
    %c0_i32 = arith.constant 0 : i32
    %c0_i32_0 = arith.constant 0 : i32
    return %arg0, %c0_i32 : i32, i32
  }
  func.func @transform_1(%arg0: i32, %arg1: i32) -> (i32, i32) {
    %c0_i32 = arith.constant 0 : i32
    %c0_i32_0 = arith.constant 0 : i32
    return %arg0, %c0_i32 : i32, i32
  }
  func.func @transform_2(%arg0: i32, %arg1: i32) -> (i32, i32) {
    %c0_i32 = arith.constant 0 : i32
    %c0_i32_0 = arith.constant 0 : i32
    %c0_i32_1 = arith.constant 0 : i32
    return %c0_i32, %c0_i32_0 : i32, i32
  }
  func.func @transform_3(%arg0: i32, %arg1: i32) -> (i32, i32) {
    %c0_i32 = arith.constant 0 : i32
    %c0_i32_0 = arith.constant 0 : i32
    %c0_i32_1 = arith.constant 0 : i32
    return %c0_i32, %c0_i32_0 : i32, i32
  }
  func.func @transform_4(%arg0: i32, %arg1: i32) -> (i32, i32) {
    %c0_i32 = arith.constant 0 : i32
    %c0_i32_0 = arith.constant 0 : i32
    %c0_i32_1 = arith.constant 0 : i32
    return %c0_i32, %c0_i32_0 : i32, i32
  }
  func.func @transform_5(%arg0: i32, %arg1: i32) -> (i32, i32, i32) {
    %c0_i32 = arith.constant 0 : i32
    %c0_i32_0 = arith.constant 0 : i32
    %c0_i32_1 = arith.constant 0 : i32
    return %arg1, %c0_i32, %c0_i32_0 : i32, i32, i32
  }
  func.func @transform_6(%arg0: i32, %arg1: i32) -> (i32, i32, i32) {
    %c0_i32 = arith.constant 0 : i32
    %c0_i32_0 = arith.constant 0 : i32
    %c0_i32_1 = arith.constant 0 : i32
    return %arg1, %c0_i32, %c0_i32_0 : i32, i32, i32
  }
  func.func @transform_7(%arg0: i32, %arg1: i32) -> (i32, i32, i32) {
    %c0_i32 = arith.constant 0 : i32
    %c0_i32_0 = arith.constant 0 : i32
    %c0_i32_1 = arith.constant 0 : i32
    return %arg1, %c0_i32, %c0_i32_0 : i32, i32, i32
  }
  func.func @transform_8(%arg0: i32, %arg1: i32) -> (i32, i32, i32) {
    %c0_i32 = arith.constant 0 : i32
    %c0_i32_0 = arith.constant 0 : i32
    %c0_i32_1 = arith.constant 0 : i32
    return %arg1, %c0_i32, %c0_i32_0 : i32, i32, i32
  }
  func.func @transform_9(%arg0: i32, %arg1: i32) -> (i32, i32, i32) {
    %c0_i32 = arith.constant 0 : i32
    %c0_i32_0 = arith.constant 0 : i32
    %c0_i32_1 = arith.constant 0 : i32
    return %arg1, %c0_i32, %c0_i32_0 : i32, i32, i32
  }
  func.func @transform_10(%arg0: i32, %arg1: i32) -> (i32, i32) {
    %c0_i32 = arith.constant 0 : i32
    %c0_i32_0 = arith.constant 0 : i32
    return %arg0, %c0_i32 : i32, i32
  }
}

</mosaic_0001>

<llo_original>
// kernel: tpu_custom_call.1
$region0: #{tpu_custom_call.1}
  #allocation0 [shape = 'u32[]', space=smem, size = 0x4, offset = 0x4, fixed_abs, tag = 'smem constant byte address 0x4 - core index']
  #allocation1 [shape = 'u32[72,128]{1,0:T(1,128)}', space=vmem, size = 0x9000, scoped, tag = 'internal scratch']
  #allocation2 [shape = 'f32[8,64]{1,0:T(8,128)}', space=vmem, size = 0x1000, scoped, tag = 'scratch operand']
  #allocation3 [shape = 'f32[8,64]{1,0:T(8,128)}', space=vmem, size = 0x1000, scoped, tag = 'scratch operand']
  #allocation4 [shape = 'f32[8,64]{1,0:T(8,128)}', space=vmem, size = 0x1000, scoped, tag = 'scratch operand']
  #allocation5 [shape = 'f32[8,32]{1,0:T(8,128)}', space=vmem, size = 0x1000, scoped, tag = 'scratch operand']
  %s0 = inlined_call_operand.vmem [shape: f32[16,32], index: 0, kind: input, shape index: {}]
  %s1 = inlined_call_operand.vmem [shape: f32[16,4], index: 1, kind: input, shape index: {}]
  %s2 = inlined_call_operand.vmem [shape: f32[32,64], index: 2, kind: input, shape index: {}]
  %s3 = inlined_call_operand.vmem [shape: f32[32,64], index: 3, kind: input, shape index: {}]
  %s4 = inlined_call_operand.vmem [shape: f32[64,32], index: 4, kind: input, shape index: {}]
  %s5 = inlined_call_operand.vmem [shape: f32[4,32,8], index: 5, kind: input, shape index: {}]
  %s6 = inlined_call_operand.vmem [shape: f32[4,4,64], index: 6, kind: input, shape index: {}]
  %s7 = inlined_call_operand.vmem [shape: f32[4,4,64], index: 7, kind: input, shape index: {}]
  %s8 = inlined_call_operand.vmem [shape: f32[4,64,4], index: 8, kind: input, shape index: {}]
  %s9 = inlined_call_operand.vmem [shape: f32[4,4,32], index: 9, kind: input, shape index: {}]
  %s10 = inlined_call_operand.hbm [shape: f32[16,32], index: 10, kind: output, shape index: {}]
  %s11 = sld [smem:[#allocation0]]
  $region81: #{tpu_custom_call.1} parent=0
    _
  %s13 = ssub.s32 1, %s11
  %s14 = scalar_select 0, %s13, %s11
  $region1: #{tpu_custom_call.1} parent=0
    #allocation6 [shape = 'u8[8192]{0}', space=vmem, size = 0x2000, scoped, tag = 'output window, operand 0']
    #allocation7 [shape = 's32[2]{0}', space=sflag, size = 0x8, scoped, tag = 'scoped memory for tpu_custom_call.1']
    %15 = vsyncpa [#allocation7], 0
    %s16 = scalar_lea.sflag [#allocation7], 1
    %17 = vsyncpa %s16, 0
    loop: start=0, step=1, limit=10
    $region2: #{tpu_custom_call.1} parent=1 // loop_pre_header
      _
    $region3: #{tpu_custom_call.1} parent=1 // loop_header
      %s19 = sphi 0, %s23
      %p20 = scmp.ge.s32.totalorder %s19, 10
      %s26 = sphi 0, %s38
      %s27 = sphi 0, %s34
      %s28 = sphi 0, %s26
      %s29 = sphi 0, %s27
      %s30 = sphi 0, %s28
      %s31 = sphi 0, %s29
      %s41 = sphi 0, %s43
      %s44 = sphi 0, %s41
      %s45 = sphi 0, %s44
      %s61 = sphi 0, %s45
      %s67 = sphi 0, %s69
      %s70 = sphi 0, %s67
      %s71 = sphi 0, %s70
      %s87 = sphi 0, %s71
      %s91 = sphi 0, %s91
      %s93 = sphi 0, %s91
      %s94 = sphi 0, %s93
      %s108 = sphi 0, %s94
      %s112 = sphi 0, %s112
      %s114 = sphi 0, %s112
      %s115 = sphi 0, %s114
      %s129 = sphi 0, %s115
      %s133 = sphi 0, %s133
      %s135 = sphi 0, %s133
      %s136 = sphi 0, %s135
      %s150 = sphi 0, %s136
      %s156 = sphi 0, %s158
      %s159 = sphi 0, %s156
      %s160 = sphi 0, %s159
      %s176 = sphi 0, %s160
      %s182 = sphi 0, %s184
      %s185 = sphi 0, %s182
      %s186 = sphi 0, %s185
      %s202 = sphi 0, %s186
      %s208 = sphi 0, %s210
      %s211 = sphi 0, %s208
      %s212 = sphi 0, %s211
      %s228 = sphi 0, %s212
      %s234 = sphi 0, %s236
      %s237 = sphi 0, %s234
      %s238 = sphi 0, %s237
      %s254 = sphi 0, %s238
      %s260 = sphi 0, %s262
      %s263 = sphi 0, %s260
      %s264 = sphi 0, %s263
      %s280 = sphi 0, %s264
      %s286 = sphi 0, %s288
      %s289 = sphi 0, %s286
      %s290 = sphi 0, %s289
      %s306 = sphi 0, %s290
    $region4: #{tpu_custom_call.1} parent=1 // loop_header_branch
      %22 = sbr.rel (%p20) target = $region8
    $region5: #{tpu_custom_call.1} parent=1 // loop_body
      %s24 = ssub.s32 %s19, 1
      %s25 = ssub.s32 %s19, 2
      %s32 = sadd.s32 1, %s27
      %p33 = scmp.ge.s32.totalorder %s32, 4
      %s34 = scalar_select %p33, 0, %s32
      %s35 = sadd.s32 1, %s26
      %s36 = scalar_select %p33, %s35, %s26
      %p37 = scmp.ge.s32.totalorder %s36, 2
      %s38 = scalar_select %p37, 0, %s36
      %s39 = ssub.s32 %s26, %s38
      %p40 = scmp.eq.s32.totalorder %s39, 0
      %s42 = sadd.s32 %s41, 1
      %s43 = scalar_select %p40, %s41, %s42
      %p46 = pneg %p40
      %p47 = scmp.eq.s32.totalorder %s19, 7
      %p48 = por %p46, %p47
      %p49 = scmp.ne.s32.totalorder %s41, %s44
      %p50 = scmp.eq.s32.totalorder %s19, 0
      %p51 = por %p49, %p50
      %p52 = scmp.ne.s32.totalorder %s41, %s44
      %p53 = scmp.eq.s32.totalorder %s24, 7
      %p54 = por %p52, %p53
      %p55 = scmp.ne.s32.totalorder %s44, %s45
      %p56 = scmp.eq.s32.totalorder %s24, 0
      %p57 = por %p55, %p56
      %p58 = scmp.ne.s32.totalorder %s44, %s45
      %p59 = scmp.eq.s32.totalorder %s25, 7
      %p60 = por %p58, %p59
      %p62 = scmp.ne.s32.totalorder %s45, %s61
      %p63 = scmp.eq.s32.totalorder %s25, 0
      %p64 = por %p62, %p63
      %s65 = ssub.s32 %s26, %s38
      %p66 = scmp.eq.s32.totalorder %s65, 0
      %s68 = sadd.s32 %s67, 1
      %s69 = scalar_select %p66, %s67, %s68
      %p72 = pneg %p66
      %p73 = scmp.eq.s32.totalorder %s19, 7
      %p74 = por %p72, %p73
      %p75 = scmp.ne.s32.totalorder %s67, %s70
      %p76 = scmp.eq.s32.totalorder %s19, 0
      %p77 = por %p75, %p76
      %p78 = scmp.ne.s32.totalorder %s67, %s70
      %p79 = scmp.eq.s32.totalorder %s24, 7
      %p80 = por %p78, %p79
      %p81 = scmp.ne.s32.totalorder %s70, %s71
      %p82 = scmp.eq.s32.totalorder %s24, 0
      %p83 = por %p81, %p82
      %p84 = scmp.ne.s32.totalorder %s70, %s71
      %p85 = scmp.eq.s32.totalorder %s25, 7
      %p86 = por %p84, %p85
      %p88 = scmp.ne.s32.totalorder %s71, %s87
      %p89 = scmp.eq.s32.totalorder %s25, 0
      %p90 = por %p88, %p89
      %s92 = sadd.s32 %s91, 1
      %p95 = scmp.eq.s32.totalorder %s19, 7
      %p96 = scmp.ne.s32.totalorder %s91, %s93
      %p97 = scmp.eq.s32.totalorder %s19, 0
      %p98 = por %p96, %p97
      %p99 = scmp.ne.s32.totalorder %s91, %s93
      %p100 = scmp.eq.s32.totalorder %s24, 7
      %p101 = por %p99, %p100
      %p102 = scmp.ne.s32.totalorder %s93, %s94
      %p103 = scmp.eq.s32.totalorder %s24, 0
      %p104 = por %p102, %p103
      %p105 = scmp.ne.s32.totalorder %s93, %s94
      %p106 = scmp.eq.s32.totalorder %s25, 7
      %p107 = por %p105, %p106
      %p109 = scmp.ne.s32.totalorder %s94, %s108
      %p110 = scmp.eq.s32.totalorder %s25, 0
      %p111 = por %p109, %p110
      %s113 = sadd.s32 %s112, 1
      %p116 = scmp.eq.s32.totalorder %s19, 7
      %p117 = scmp.ne.s32.totalorder %s112, %s114
      %p118 = scmp.eq.s32.totalorder %s19, 0
      %p119 = por %p117, %p118
      %p120 = scmp.ne.s32.totalorder %s112, %s114
      %p121 = scmp.eq.s32.totalorder %s24, 7
      %p122 = por %p120, %p121
      %p123 = scmp.ne.s32.totalorder %s114, %s115
      %p124 = scmp.eq.s32.totalorder %s24, 0
      %p125 = por %p123, %p124
      %p126 = scmp.ne.s32.totalorder %s114, %s115
      %p127 = scmp.eq.s32.totalorder %s25, 7
      %p128 = por %p126, %p127
      %p130 = scmp.ne.s32.totalorder %s115, %s129
      %p131 = scmp.eq.s32.totalorder %s25, 0
      %p132 = por %p130, %p131
      %s134 = sadd.s32 %s133, 1
      %p137 = scmp.eq.s32.totalorder %s19, 7
      %p138 = scmp.ne.s32.totalorder %s133, %s135
      %p139 = scmp.eq.s32.totalorder %s19, 0
      %p140 = por %p138, %p139
      %p141 = scmp.ne.s32.totalorder %s133, %s135
      %p142 = scmp.eq.s32.totalorder %s24, 7
      %p143 = por %p141, %p142
      %p144 = scmp.ne.s32.totalorder %s135, %s136
      %p145 = scmp.eq.s32.totalorder %s24, 0
      %p146 = por %p144, %p145
      %p147 = scmp.ne.s32.totalorder %s135, %s136
      %p148 = scmp.eq.s32.totalorder %s25, 7
      %p149 = por %p147, %p148
      %p151 = scmp.ne.s32.totalorder %s136, %s150
      %p152 = scmp.eq.s32.totalorder %s25, 0
      %p153 = por %p151, %p152
      %s154 = ssub.s32 %s27, %s34
      %p155 = scmp.eq.s32.totalorder %s154, 0
      %s157 = sadd.s32 %s156, 1
      %s158 = scalar_select %p155, %s156, %s157
      %p161 = pneg %p155
      %p162 = scmp.eq.s32.totalorder %s19, 7
      %p163 = por %p161, %p162
      %p164 = scmp.ne.s32.totalorder %s156, %s159
      %p165 = scmp.eq.s32.totalorder %s19, 0
      %p166 = por %p164, %p165
      %p167 = scmp.ne.s32.totalorder %s156, %s159
      %p168 = scmp.eq.s32.totalorder %s24, 7
      %p169 = por %p167, %p168
      %p170 = scmp.ne.s32.totalorder %s159, %s160
      %p171 = scmp.eq.s32.totalorder %s24, 0
      %p172 = por %p170, %p171
      %p173 = scmp.ne.s32.totalorder %s159, %s160
      %p174 = scmp.eq.s32.totalorder %s25, 7
      %p175 = por %p173, %p174
      %p177 = scmp.ne.s32.totalorder %s160, %s176
      %p178 = scmp.eq.s32.totalorder %s25, 0
      %p179 = por %p177, %p178
      %s180 = ssub.s32 %s27, %s34
      %p181 = scmp.eq.s32.totalorder %s180, 0
      %s183 = sadd.s32 %s182, 1
      %s184 = scalar_select %p181, %s182, %s183
      %p187 = pneg %p181
      %p188 = scmp.eq.s32.totalorder %s19, 7
      %p189 = por %p187, %p188
      %p190 = scmp.ne.s32.totalorder %s182, %s185
      %p191 = scmp.eq.s32.totalorder %s19, 0
      %p192 = por %p190, %p191
      %p193 = scmp.ne.s32.totalorder %s182, %s185
      %p194 = scmp.eq.s32.totalorder %s24, 7
      %p195 = por %p193, %p194
      %p196 = scmp.ne.s32.totalorder %s185, %s186
      %p197 = scmp.eq.s32.totalorder %s24, 0
      %p198 = por %p196, %p197
      %p199 = scmp.ne.s32.totalorder %s185, %s186
      %p200 = scmp.eq.s32.totalorder %s25, 7
      %p201 = por %p199, %p200
      %p203 = scmp.ne.s32.totalorder %s186, %s202
      %p204 = scmp.eq.s32.totalorder %s25, 0
      %p205 = por %p203, %p204
      %s206 = ssub.s32 %s27, %s34
      %p207 = scmp.eq.s32.totalorder %s206, 0
      %s209 = sadd.s32 %s208, 1
      %s210 = scalar_select %p207, %s208, %s209
      %p213 = pneg %p207
      %p214 = scmp.eq.s32.totalorder %s19, 7
      %p215 = por %p213, %p214
      %p216 = scmp.ne.s32.totalorder %s208, %s211
      %p217 = scmp.eq.s32.totalorder %s19, 0
      %p218 = por %p216, %p217
      %p219 = scmp.ne.s32.totalorder %s208, %s211
      %p220 = scmp.eq.s32.totalorder %s24, 7
      %p221 = por %p219, %p220
      %p222 = scmp.ne.s32.totalorder %s211, %s212
      %p223 = scmp.eq.s32.totalorder %s24, 0
      %p224 = por %p222, %p223
      %p225 = scmp.ne.s32.totalorder %s211, %s212
      %p226 = scmp.eq.s32.totalorder %s25, 7
      %p227 = por %p225, %p226
      %p229 = scmp.ne.s32.totalorder %s212, %s228
      %p230 = scmp.eq.s32.totalorder %s25, 0
      %p231 = por %p229, %p230
      %s232 = ssub.s32 %s27, %s34
      %p233 = scmp.eq.s32.totalorder %s232, 0
      %s235 = sadd.s32 %s234, 1
      %s236 = scalar_select %p233, %s234, %s235
      %p239 = pneg %p233
      %p240 = scmp.eq.s32.totalorder %s19, 7
      %p241 = por %p239, %p240
      %p242 = scmp.ne.s32.totalorder %s234, %s237
      %p243 = scmp.eq.s32.totalorder %s19, 0
      %p244 = por %p242, %p243
      %p245 = scmp.ne.s32.totalorder %s234, %s237
      %p246 = scmp.eq.s32.totalorder %s24, 7
      %p247 = por %p245, %p246
      %p248 = scmp.ne.s32.totalorder %s237, %s238
      %p249 = scmp.eq.s32.totalorder %s24, 0
      %p250 = por %p248, %p249
      %p251 = scmp.ne.s32.totalorder %s237, %s238
      %p252 = scmp.eq.s32.totalorder %s25, 7
      %p253 = por %p251, %p252
      %p255 = scmp.ne.s32.totalorder %s238, %s254
      %p256 = scmp.eq.s32.totalorder %s25, 0
      %p257 = por %p255, %p256
      %s258 = ssub.s32 %s27, %s34
      %p259 = scmp.eq.s32.totalorder %s258, 0
      %s261 = sadd.s32 %s260, 1
      %s262 = scalar_select %p259, %s260, %s261
      %p265 = pneg %p259
      %p266 = scmp.eq.s32.totalorder %s19, 7
      %p267 = por %p265, %p266
      %p268 = scmp.ne.s32.totalorder %s260, %s263
      %p269 = scmp.eq.s32.totalorder %s19, 0
      %p270 = por %p268, %p269
      %p271 = scmp.ne.s32.totalorder %s260, %s263
      %p272 = scmp.eq.s32.totalorder %s24, 7
      %p273 = por %p271, %p272
      %p274 = scmp.ne.s32.totalorder %s263, %s264
      %p275 = scmp.eq.s32.totalorder %s24, 0
      %p276 = por %p274, %p275
      %p277 = scmp.ne.s32.totalorder %s263, %s264
      %p278 = scmp.eq.s32.totalorder %s25, 7
      %p279 = por %p277, %p278
      %p281 = scmp.ne.s32.totalorder %s264, %s280
      %p282 = scmp.eq.s32.totalorder %s25, 0
      %p283 = por %p281, %p282
      %s284 = ssub.s32 %s26, %s38
      %p285 = scmp.eq.s32.totalorder %s284, 0
      %s287 = sadd.s32 %s286, 1
      %s288 = scalar_select %p285, %s286, %s287
      %p291 = pneg %p285
      %p292 = scmp.eq.s32.totalorder %s19, 7
      %p293 = por %p291, %p292
      %p294 = scmp.ne.s32.totalorder %s286, %s289
      %p295 = scmp.eq.s32.totalorder %s19, 0
      %p296 = por %p294, %p295
      %p297 = scmp.ne.s32.totalorder %s286, %s289
      %p298 = scmp.eq.s32.totalorder %s24, 7
      %p299 = por %p297, %p298
      %p300 = scmp.ne.s32.totalorder %s289, %s290
      %p301 = scmp.eq.s32.totalorder %s24, 0
      %p302 = por %p300, %p301
      %p303 = scmp.ne.s32.totalorder %s289, %s290
      %p304 = scmp.eq.s32.totalorder %s25, 7
      %p305 = por %p303, %p304
      %p307 = scmp.ne.s32.totalorder %s290, %s306
      %p308 = scmp.eq.s32.totalorder %s25, 0
      %p309 = por %p307, %p308
      %p310 = scmp.le.s32.totalorder 1, %s19
      %p311 = scmp.lt.s32.totalorder %s19, 9
      %p312 = pnand %p310, %p311
      %p313 = pneg %p312
      // Predicated region
      $region9: #{tpu_custom_call.1} parent=5 // pred_check
        _
      $region10: #{tpu_custom_call.1} parent=5 // pred_check_branch
        %315 = sbr.rel (%p312) target = $region12
      $region11: #{tpu_custom_call.1} parent=5 // pred_region
        %s316 = ssub.s32 %s19, 1
        // Predicated region
        $region13: #{tpu_custom_call.1} parent=11 // pred_check
          %p317 = pneg %p104
        $region14: #{tpu_custom_call.1} parent=11 // pred_check_branch
          %319 = sbr.rel (%p317) target = $region16
        $region15: #{tpu_custom_call.1} parent=11 // pred_region
          _
        $region16: #{tpu_custom_call.1} parent=11 // pred_fallthru
          _
        // Predicated region
        $region17: #{tpu_custom_call.1} parent=11 // pred_check
          %p320 = pneg %p125
        $region18: #{tpu_custom_call.1} parent=11 // pred_check_branch
          %322 = sbr.rel (%p320) target = $region20
        $region19: #{tpu_custom_call.1} parent=11 // pred_region
          _
        $region20: #{tpu_custom_call.1} parent=11 // pred_fallthru
          _
        // Predicated region
        $region21: #{tpu_custom_call.1} parent=11 // pred_check
          %p323 = pneg %p146
        $region22: #{tpu_custom_call.1} parent=11 // pred_check_branch
          %325 = sbr.rel (%p323) target = $region24
        $region23: #{tpu_custom_call.1} parent=11 // pred_region
          _
        $region24: #{tpu_custom_call.1} parent=11 // pred_fallthru
          _
      $region12: #{tpu_custom_call.1} parent=5 // pred_fallthru
        _
      %p326 = scmp.lt.s32.totalorder %s19, 8
      // Predicated region
      $region25: #{tpu_custom_call.1} parent=5 // pred_check
        %p327 = pneg %p326
      $region26: #{tpu_custom_call.1} parent=5 // pred_check_branch
        %329 = sbr.rel (%p327) target = $region28
      $region27: #{tpu_custom_call.1} parent=5 // pred_region
        // Predicated region
        $region29: #{tpu_custom_call.1} parent=27 // pred_check
          %p330 = pneg %p51
        $region30: #{tpu_custom_call.1} parent=27 // pred_check_branch
          %332 = sbr.rel (%p330) target = $region32
        $region31: #{tpu_custom_call.1} parent=27 // pred_region
          %p333 = scmp.lt.s32.totalorder %s26, 1
          %s334 = scalar_select %p333, %s26, 1
          %s335 = smul.addr %s334, 8
          %s336 = scalar_lea.vmem %s0, %s335
        $region32: #{tpu_custom_call.1} parent=27 // pred_fallthru
          _
        // Predicated region
        $region33: #{tpu_custom_call.1} parent=27 // pred_check
          %p337 = pneg %p77
        $region34: #{tpu_custom_call.1} parent=27 // pred_check_branch
          %339 = sbr.rel (%p337) target = $region36
        $region35: #{tpu_custom_call.1} parent=27 // pred_region
          %p340 = scmp.lt.s32.totalorder %s26, 1
          %s341 = scalar_select %p340, %s26, 1
          %s342 = smul.addr %s341, 8
          %s343 = scalar_lea.vmem %s1, %s342
        $region36: #{tpu_custom_call.1} parent=27 // pred_fallthru
          _
        // Predicated region
        $region37: #{tpu_custom_call.1} parent=27 // pred_check
          %p344 = pneg %p166
        $region38: #{tpu_custom_call.1} parent=27 // pred_check_branch
          %346 = sbr.rel (%p344) target = $region40
        $region39: #{tpu_custom_call.1} parent=27 // pred_region
          %p347 = scmp.lt.s32.totalorder %s27, 3
          %s348 = scalar_select %p347, %s27, 3
          %s349 = smul.addr %s348, 4
          %s350 = smul.addr %s349, 8
          %s351 = scalar_lea.vmem %s5, %s350
        $region40: #{tpu_custom_call.1} parent=27 // pred_fallthru
          _
        // Predicated region
        $region41: #{tpu_custom_call.1} parent=27 // pred_check
          %p352 = pneg %p192
        $region42: #{tpu_custom_call.1} parent=27 // pred_check_branch
          %354 = sbr.rel (%p352) target = $region44
        $region43: #{tpu_custom_call.1} parent=27 // pred_region
          %p355 = scmp.lt.s32.totalorder %s27, 3
          %s356 = scalar_select %p355, %s27, 3
          %s357 = smul.addr %s356, 4
          %s358 = scalar_lea.vmem %s6, %s357
        $region44: #{tpu_custom_call.1} parent=27 // pred_fallthru
          _
        // Predicated region
        $region45: #{tpu_custom_call.1} parent=27 // pred_check
          %p359 = pneg %p218
        $region46: #{tpu_custom_call.1} parent=27 // pred_check_branch
          %361 = sbr.rel (%p359) target = $region48
        $region47: #{tpu_custom_call.1} parent=27 // pred_region
          %p362 = scmp.lt.s32.totalorder %s27, 3
          %s363 = scalar_select %p362, %s27, 3
          %s364 = smul.addr %s363, 4
          %s365 = scalar_lea.vmem %s7, %s364
        $region48: #{tpu_custom_call.1} parent=27 // pred_fallthru
          _
        // Predicated region
        $region49: #{tpu_custom_call.1} parent=27 // pred_check
          %p366 = pneg %p244
        $region50: #{tpu_custom_call.1} parent=27 // pred_check_branch
          %368 = sbr.rel (%p366) target = $region52
        $region51: #{tpu_custom_call.1} parent=27 // pred_region
          %p369 = scmp.lt.s32.totalorder %s27, 3
          %s370 = scalar_select %p369, %s27, 3
          %s371 = smul.addr %s370, 8
          %s372 = smul.addr %s371, 8
          %s373 = scalar_lea.vmem %s8, %s372
        $region52: #{tpu_custom_call.1} parent=27 // pred_fallthru
          _
        // Predicated region
        $region53: #{tpu_custom_call.1} parent=27 // pred_check
          %p374 = pneg %p270
        $region54: #{tpu_custom_call.1} parent=27 // pred_check_branch
          %376 = sbr.rel (%p374) target = $region56
        $region55: #{tpu_custom_call.1} parent=27 // pred_region
          %p377 = scmp.lt.s32.totalorder %s27, 3
          %s378 = scalar_select %p377, %s27, 3
          %s379 = smul.addr %s378, 4
          %s380 = scalar_lea.vmem %s9, %s379
        $region56: #{tpu_custom_call.1} parent=27 // pred_fallthru
          _
      $region28: #{tpu_custom_call.1} parent=5 // pred_fallthru
        _
      %p381 = scmp.le.s32.totalorder 1, %s19
      %p382 = scmp.lt.s32.totalorder %s19, 9
      %p383 = pnand %p381, %p382
      %p384 = pneg %p383
      // Predicated region
      $region57: #{tpu_custom_call.1} parent=5 // pred_check
        _
      $region58: #{tpu_custom_call.1} parent=5 // pred_check_branch
        %386 = sbr.rel (%p383) target = $region60
      $region59: #{tpu_custom_call.1} parent=5 // pred_region
        %s387 = ssub.s32 %s19, 1
        %p388 = scmp.lt.s32.totalorder %s28, 1
        %s389 = scalar_select %p388, %s28, 1
        %s390 = smul.addr %s389, 8
        %s391 = scalar_lea.vmem %s0, %s390
        %p392 = pneg %p57
        %p393 = pneg %p54
        %p394 = scmp.lt.s32.totalorder %s28, 1
        %s395 = scalar_select %p394, %s28, 1
        %s396 = smul.addr %s395, 8
        %s397 = scalar_lea.vmem %s1, %s396
        %p398 = pneg %p83
        %p399 = pneg %p80
        %p400 = pneg %p104
        %p401 = pneg %p101
        %p402 = pneg %p125
        %p403 = pneg %p122
        %p404 = pneg %p146
        %p405 = pneg %p143
        %p406 = scmp.lt.s32.totalorder %s29, 3
        %s407 = scalar_select %p406, %s29, 3
        %s408 = smul.addr %s407, 4
        %s409 = smul.addr %s408, 8
        %s410 = scalar_lea.vmem %s5, %s409
        %p411 = pneg %p172
        %p412 = pneg %p169
        %p413 = scmp.lt.s32.totalorder %s29, 3
        %s414 = scalar_select %p413, %s29, 3
        %s415 = smul.addr %s414, 4
        %s416 = scalar_lea.vmem %s6, %s415
        %p417 = pneg %p198
        %p418 = pneg %p195
        %p419 = scmp.lt.s32.totalorder %s29, 3
        %s420 = scalar_select %p419, %s29, 3
        %s421 = smul.addr %s420, 4
        %s422 = scalar_lea.vmem %s7, %s421
        %p423 = pneg %p224
        %p424 = pneg %p221
        %p425 = scmp.lt.s32.totalorder %s29, 3
        %s426 = scalar_select %p425, %s29, 3
        %s427 = smul.addr %s426, 8
        %s428 = smul.addr %s427, 8
        %s429 = scalar_lea.vmem %s8, %s428
        %p430 = pneg %p250
        %p431 = pneg %p247
        %p432 = scmp.lt.s32.totalorder %s29, 3
        %s433 = scalar_select %p432, %s29, 3
        %s434 = smul.addr %s433, 4
        %s435 = scalar_lea.vmem %s9, %s434
        %p436 = pneg %p276
        %p437 = pneg %p273
        %p438 = pneg %p302
        %p439 = pneg %p299
        %s440 = sand.u32 %s289, 1
        %s441 = scalar_lea.sflag [#allocation7], %s440
        %s442 = sand.u32 %s289, 1
        %s443 = smul.addr %s442, 8
        %s444 = scalar_lea.vmem [#allocation6], %s443
        %p445 = scmp.lt.s32.totalorder %s28, 1
        %s446 = scalar_select %p445, %s28, 1
        %s447 = smul.addr %s446, 8
        %s448 = scalar_lea.vmem %s0, %s447
        %p449 = scmp.lt.s32.totalorder %s28, 1
        %s450 = scalar_select %p449, %s28, 1
        %s451 = smul.addr %s450, 8
        %s452 = scalar_lea.vmem %s1, %s451
        %p453 = scmp.lt.s32.totalorder %s29, 3
        %s454 = scalar_select %p453, %s29, 3
        %s455 = smul.addr %s454, 4
        %s456 = smul.addr %s455, 8
        %s457 = scalar_lea.vmem %s5, %s456
        %p458 = scmp.lt.s32.totalorder %s29, 3
        %s459 = scalar_select %p458, %s29, 3
        %s460 = smul.addr %s459, 4
        %s461 = scalar_lea.vmem %s6, %s460
        %p462 = scmp.lt.s32.totalorder %s29, 3
        %s463 = scalar_select %p462, %s29, 3
        %s464 = smul.addr %s463, 4
        %s465 = scalar_lea.vmem %s7, %s464
        %p466 = scmp.lt.s32.totalorder %s29, 3
        %s467 = scalar_select %p466, %s29, 3
        %s468 = smul.addr %s467, 8
        %s469 = smul.addr %s468, 8
        %s470 = scalar_lea.vmem %s8, %s469
        %p471 = scmp.lt.s32.totalorder %s29, 3
        %s472 = scalar_select %p471, %s29, 3
        %s473 = smul.addr %s472, 4
        %s474 = scalar_lea.vmem %s9, %s473
        %v475 = vld [vmem:[%s448] sm:$0xff]
        %p476 = scmp.eq.s32.totalorder %s29, 0
        // Predicated region
        $region61: #{tpu_custom_call.1} parent=59 // pred_check
          %p477 = pneg %p476
        $region62: #{tpu_custom_call.1} parent=59 // pred_check_branch
          %479 = sbr.rel (%p477) target = $region64
        $region63: #{tpu_custom_call.1} parent=59 // pred_region
          %v480 = vld [vmem:[%s2] sm:$0xff]
          %v481 = vld [vmem:[%s2 + $0x8] sm:$0xff]
          %v482 = vld [vmem:[%s2 + $0x10] sm:$0xff]
          %v483 = vld [vmem:[%s2 + $0x18] sm:$0xff]
          %vm484 = vcmask 261120
          %v486 = vsel %vm484, %v475, 0
          %488 = vmatpush.msra.mxu0 0.0
          %489 = vmatpush.msra.mxu0 0.0
          %490 = vmatpush.msra.mxu0 0.0
          %491 = vmatpush.msra.mxu0 0.0
          %492 = vmatpush.msra.mxu0 0.0
          %493 = vmatpush.msra.mxu0 0.0
          %494 = vmatpush.msra.mxu0 0.0
          %495 = vmatpush.msra.mxu0 0.0
          %496 = vmatpush.msra.mxu0 0.0
          %497 = vmatpush.msra.mxu0 0.0
          %498 = vmatpush.msra.mxu0 0.0
          %499 = vmatpush.msra.mxu0 0.0
          %500 = vmatpush.msra.mxu0 %v483
          %501 = vmatpush.msra.mxu0 %v482
          %502 = vmatpush.msra.mxu0 %v481
          %503 = vmatpush.msra.mxu0 %v480
          %504 = vmatmul.f32.gmra.mxu0 %v486
          %v505 = vpop.f32.mrf.mxu0
          %v506 = vadd.f32 0.0, %v505
          %507 = vdwg.mxu0
          %vm508 = vcmask 523264
          %509 = vst.msk [vmem:[#allocation2] sm:$0xff] %vm508, %v506
          %v510 = vld [vmem:[%s3] sm:$0xff]
          %v511 = vld [vmem:[%s3 + $0x8] sm:$0xff]
          %v512 = vld [vmem:[%s3 + $0x10] sm:$0xff]
          %v513 = vld [vmem:[%s3 + $0x18] sm:$0xff]
          %514 = vmatpush.msra.mxu0 0.0
          %515 = vmatpush.msra.mxu0 0.0
          %516 = vmatpush.msra.mxu0 0.0
          %517 = vmatpush.msra.mxu0 0.0
          %518 = vmatpush.msra.mxu0 0.0
          %519 = vmatpush.msra.mxu0 0.0
          %520 = vmatpush.msra.mxu0 0.0
          %521 = vmatpush.msra.mxu0 0.0
          %522 = vmatpush.msra.mxu0 0.0
          %523 = vmatpush.msra.mxu0 0.0
          %524 = vmatpush.msra.mxu0 0.0
          %525 = vmatpush.msra.mxu0 0.0
          %526 = vmatpush.msra.mxu0 %v513
          %527 = vmatpush.msra.mxu0 %v512
          %528 = vmatpush.msra.mxu0 %v511
          %529 = vmatpush.msra.mxu0 %v510
          %530 = vmatmul.f32.gmra.mxu0 %v486
          %v531 = vpop.f32.mrf.mxu0
          %v532 = vadd.f32 0.0, %v531
          %533 = vdwg.mxu0
          %534 = vst.msk [vmem:[#allocation3] sm:$0xff] %vm508, %v532
          %535 = vst.msk [vmem:[#allocation4] sm:$0xff] %vm508, 0.0
          %536 = vst.msk [vmem:[#allocation5] sm:$0xff] %vm484, 0.0
        $region64: #{tpu_custom_call.1} parent=59 // pred_fallthru
          _
        %v537 = vld [vmem:[%s457] sm:$0xff]
        %v538 = vld [vmem:[%s457 + $0x8] sm:$0xff]
        %v539 = vld [vmem:[%s457 + $0x10] sm:$0xff]
        %v540 = vld [vmem:[%s457 + $0x18] sm:$0xff]
        %vm541 = vcmask 261120
        %v543 = vsel %vm541, %v475, 0
        %545 = vmatpush.msra.mxu0 0.0
        %546 = vmatpush.msra.mxu0 0.0
        %547 = vmatpush.msra.mxu0 0.0
        %548 = vmatpush.msra.mxu0 0.0
        %549 = vmatpush.msra.mxu0 0.0
        %550 = vmatpush.msra.mxu0 0.0
        %551 = vmatpush.msra.mxu0 0.0
        %552 = vmatpush.msra.mxu0 0.0
        %553 = vmatpush.msra.mxu0 0.0
        %554 = vmatpush.msra.mxu0 0.0
        %555 = vmatpush.msra.mxu0 0.0
        %556 = vmatpush.msra.mxu0 0.0
        %557 = vmatpush.msra.mxu0 %v540
        %558 = vmatpush.msra.mxu0 %v539
        %559 = vmatpush.msra.mxu0 %v538
        %560 = vmatpush.msra.mxu0 %v537
        %561 = vmatmul.f32.gmra.mxu0 %v543
        %v562 = vpop.f32.mrf.mxu0
        %v563 = vadd.f32 0.0, %v562
        %564 = vdwg.mxu0
        %v565 = vld [vmem:[#allocation2] sm:$0xff]
        %v566 = vld [vmem:[%s461] sm:$0xf]
        %vm567 = vcmask 31744
        %v569 = vsel %vm567, %v563, 0
        %vm571 = vcmask 1043456
        %v573 = vsel %vm571, %v566, 0
        %575 = vmatpush.msra.mxu0 0.0
        %576 = vmatpush.msra.mxu0 0.0
        %577 = vmatpush.msra.mxu0 0.0
        %578 = vmatpush.msra.mxu0 0.0
        %579 = vmatpush.msra.mxu0 0.0
        %580 = vmatpush.msra.mxu0 0.0
        %581 = vmatpush.msra.mxu0 0.0
        %582 = vmatpush.msra.mxu0 0.0
        %583 = vmatpush.msra.mxu0 0.0
        %584 = vmatpush.msra.mxu0 0.0
        %585 = vmatpush.msra.mxu0 0.0
        %586 = vmatpush.msra.mxu0 0.0
        %587 = vmatpush.msra.mxu0 0.0
        %588 = vmatpush.msra.mxu0 0.0
        %589 = vmatpush.msra.mxu0 0.0
        %590 = vmatpush.msra.mxu0 %v573
        %591 = vmatmul.f32.gmra.mxu0 %v569
        %v592 = vpop.f32.mrf.mxu0
        %v593 = vadd.f32 0.0, %v592
        %594 = vdwg.mxu0
        %v595 = vmul.f32 %v593, 0.5
        %v596 = vadd.f32 %v565, %v595
        %v597 = vld [vmem:[#allocation3] sm:$0xff]
        %v598 = vld [vmem:[%s465] sm:$0xf]
        %599 = vrot.lane.b32.xlu0 %v563, 124
        %v600 = vpop.permute.xlu0 %599
        %v601 = vsel %vm567, %v600, 0
        %v604 = vsel %vm571, %v598, 0
        %606 = vmatpush.msra.mxu0 0.0
        %607 = vmatpush.msra.mxu0 0.0
        %608 = vmatpush.msra.mxu0 0.0
        %609 = vmatpush.msra.mxu0 0.0
        %610 = vmatpush.msra.mxu0 0.0
        %611 = vmatpush.msra.mxu0 0.0
        %612 = vmatpush.msra.mxu0 0.0
        %613 = vmatpush.msra.mxu0 0.0
        %614 = vmatpush.msra.mxu0 0.0
        %615 = vmatpush.msra.mxu0 0.0
        %616 = vmatpush.msra.mxu0 0.0
        %617 = vmatpush.msra.mxu0 0.0
        %618 = vmatpush.msra.mxu0 0.0
        %619 = vmatpush.msra.mxu0 0.0
        %620 = vmatpush.msra.mxu0 0.0
        %621 = vmatpush.msra.mxu0 %v604
        %622 = vmatmul.f32.gmra.mxu0 %v601
        %v623 = vpop.f32.mrf.mxu0
        %v624 = vadd.f32 0.0, %v623
        %625 = vdwg.mxu0
        %v626 = vmul.f32 %v624, 0.5
        %v627 = vadd.f32 %v597, %v626
        %v628 = vxor.u32 %v596, 2147483648
        %v629 = vmul.f32 %v628, 1.442695
        %v630 = vpow.pop %v629
        %v631 = vadd.f32 %v630, 1.0
        %v632 = vrcp.pop %v631
        %v633 = vmul.f32 %v631, %v632
        %v634 = vsub.f32 1.0, %v633
        %v635 = vmul.f32 %v632, %v634
        %v636 = vadd.f32 %v632, %v635
        %vm637 = vweird.f32 %v631
        %vm638 = vweird.f32 %v632
        %vm639 = vmor %vm637, %vm638
        %v640 = vsel %vm639, %v632, %v636
        %v641 = vand.u32 2147483647, %v631
        %vm642 = vcmp.eq.f32.partialorder %v641, 8.507059e+37
        %v643 = vand.u32 %v631, 2147483648
        %v644 = vor.u32 1.1754944e-38, %v643
        %v645 = vsel %vm642, %v644, %v640
        %v646 = vmul.f32 1.0, %v645
        %v647 = vmul.f32 %v596, %v646
        %v648 = vmul.f32 %v647, %v627
        %v649 = vlaneseq
        %v650 = vand.u32 %v649, 127
        %v651 = vstv %s29
        %vm652 = vcmp.eq.s32.totalorder %v650, %v651
        %v653 = vld [vmem:[%s452] sm:$0xff]
        %v654 = vsel %vm652, %v653, 0.0
        %v655 = vsel %vm567, %v654, 0.0
        %656 = vadd.xlane.f32.xlu0 %v655
        %v657 = vpop.xlane.xlu0 %656
        %v658 = vmul.f32 %v657, %v648
        %v659 = vld [vmem:[#allocation4] sm:$0xff]
        %v660 = vadd.f32 %v659, %v658
        %vm661 = vcmask 523264
        %662 = vst.msk [vmem:[#allocation4] sm:$0xff] %vm661, %v660
        %v663 = vld [vmem:[%s470] sm:$0xff]
        %v664 = vld [vmem:[%s470 + $0x8] sm:$0xff]
        %v665 = vld [vmem:[%s470 + $0x10] sm:$0xff]
        %v666 = vld [vmem:[%s470 + $0x18] sm:$0xff]
        %v667 = vld [vmem:[%s470 + $0x20] sm:$0xff]
        %v668 = vld [vmem:[%s470 + $0x28] sm:$0xff]
        %v669 = vld [vmem:[%s470 + $0x30] sm:$0xff]
        %v670 = vld [vmem:[%s470 + $0x38] sm:$0xff]
        %v672 = vsel %vm661, %v658, 0
        %674 = vmatpush.msra.mxu0 0.0
        %675 = vmatpush.msra.mxu0 0.0
        %676 = vmatpush.msra.mxu0 0.0
        %677 = vmatpush.msra.mxu0 0.0
        %678 = vmatpush.msra.mxu0 0.0
        %679 = vmatpush.msra.mxu0 0.0
        %680 = vmatpush.msra.mxu0 0.0
        %681 = vmatpush.msra.mxu0 0.0
        %682 = vmatpush.msra.mxu0 %v670
        %683 = vmatpush.msra.mxu0 %v669
        %684 = vmatpush.msra.mxu0 %v668
        %685 = vmatpush.msra.mxu0 %v667
        %686 = vmatpush.msra.mxu0 %v666
        %687 = vmatpush.msra.mxu0 %v665
        %688 = vmatpush.msra.mxu0 %v664
        %689 = vmatpush.msra.mxu0 %v663
        %690 = vmatmul.f32.gmra.mxu0 %v672
        %v691 = vpop.f32.mrf.mxu0
        %v692 = vadd.f32 0.0, %v691
        %693 = vdwg.mxu0
        %v694 = vld [vmem:[#allocation5] sm:$0xff]
        %v695 = vld [vmem:[%s474] sm:$0xf]
        %v697 = vsel %vm567, %v692, 0
        %v700 = vsel %vm571, %v695, 0
        %702 = vmatpush.msra.mxu0 0.0
        %703 = vmatpush.msra.mxu0 0.0
        %704 = vmatpush.msra.mxu0 0.0
        %705 = vmatpush.msra.mxu0 0.0
        %706 = vmatpush.msra.mxu0 0.0
        %707 = vmatpush.msra.mxu0 0.0
        %708 = vmatpush.msra.mxu0 0.0
        %709 = vmatpush.msra.mxu0 0.0
        %710 = vmatpush.msra.mxu0 0.0
        %711 = vmatpush.msra.mxu0 0.0
        %712 = vmatpush.msra.mxu0 0.0
        %713 = vmatpush.msra.mxu0 0.0
        %714 = vmatpush.msra.mxu0 0.0
        %715 = vmatpush.msra.mxu0 0.0
        %716 = vmatpush.msra.mxu0 0.0
        %717 = vmatpush.msra.mxu0 %v700
        %718 = vmatmul.f32.gmra.mxu0 %v697
        %v719 = vpop.f32.mrf.mxu0
        %v720 = vadd.f32 0.0, %v719
        %721 = vdwg.mxu0
        %v722 = vmul.f32 %v720, 0.5
        %v723 = vadd.f32 %v694, %v722
        %724 = vst.msk [vmem:[#allocation5] sm:$0xff] %vm541, %v723
        %p725 = scmp.eq.s32.totalorder %s29, 3
        // Predicated region
        $region65: #{tpu_custom_call.1} parent=59 // pred_check
          %p726 = pneg %p725
        $region66: #{tpu_custom_call.1} parent=59 // pred_check_branch
          %728 = sbr.rel (%p726) target = $region68
        $region67: #{tpu_custom_call.1} parent=59 // pred_region
          %v729 = vld [vmem:[#allocation4] sm:$0xff]
          %v730 = vld [vmem:[%s4] sm:$0xff]
          %v731 = vld [vmem:[%s4 + $0x8] sm:$0xff]
          %v732 = vld [vmem:[%s4 + $0x10] sm:$0xff]
          %v733 = vld [vmem:[%s4 + $0x18] sm:$0xff]
          %v734 = vld [vmem:[%s4 + $0x20] sm:$0xff]
          %v735 = vld [vmem:[%s4 + $0x28] sm:$0xff]
          %v736 = vld [vmem:[%s4 + $0x30] sm:$0xff]
          %v737 = vld [vmem:[%s4 + $0x38] sm:$0xff]
          %v738 = vld [vmem:[#allocation5] sm:$0xff]
          %v740 = vsel %vm661, %v729, 0
          %742 = vmatpush.msra.mxu0 0.0
          %743 = vmatpush.msra.mxu0 0.0
          %744 = vmatpush.msra.mxu0 0.0
          %745 = vmatpush.msra.mxu0 0.0
          %746 = vmatpush.msra.mxu0 0.0
          %747 = vmatpush.msra.mxu0 0.0
          %748 = vmatpush.msra.mxu0 0.0
          %749 = vmatpush.msra.mxu0 0.0
          %750 = vmatpush.msra.mxu0 %v737
          %751 = vmatpush.msra.mxu0 %v736
          %752 = vmatpush.msra.mxu0 %v735
          %753 = vmatpush.msra.mxu0 %v734
          %754 = vmatpush.msra.mxu0 %v733
          %755 = vmatpush.msra.mxu0 %v732
          %756 = vmatpush.msra.mxu0 %v731
          %757 = vmatpush.msra.mxu0 %v730
          %758 = vmatmul.f32.gmra.mxu0 %v740
          %v759 = vpop.f32.mrf.mxu0
          %v760 = vadd.f32 %v738, %v759
          %761 = vdwg.mxu0
          %762 = vst.msk [vmem:[%s444] sm:$0xff] %vm541, %v760
        $region68: #{tpu_custom_call.1} parent=59 // pred_fallthru
          _
        %s763 = sand.u32 %s289, 1
        %s764 = scalar_lea.sflag [#allocation7], %s763
        %s765 = sand.u32 %s289, 1
        %s766 = smul.addr %s765, 8
        %s767 = scalar_lea.vmem [#allocation6], %s766
        // Predicated region
        $region69: #{tpu_custom_call.1} parent=59 // pred_check
          %p768 = pneg %p299
        $region70: #{tpu_custom_call.1} parent=59 // pred_check_branch
          %770 = sbr.rel (%p768) target = $region72
        $region71: #{tpu_custom_call.1} parent=59 // pred_region
          %772 = vsyncadd %s764, 0
          %s773 = smul.addr %s28, 8
          %s774 = scalar_lea.hbm %s10, %s773
          %s776 = sshll.u32 %s767, 4
          %s777 = int_to_ptr.vmem [resolvable:$true] %s776
          %s778 = sshll.u32 %s774, 4
          %s779 = int_to_ptr.hbm [resolvable:$true] %s778
          %781 = dma.vmem_to_hbm [thread:$0]  %s777, 128, %s779, %s764
        $region72: #{tpu_custom_call.1} parent=59 // pred_fallthru
          _
      $region60: #{tpu_custom_call.1} parent=5 // pred_fallthru
        _
      %p782 = scmp.le.s32.totalorder 2, %s19
      // Predicated region
      $region73: #{tpu_custom_call.1} parent=5 // pred_check
        %p783 = pneg %p782
      $region74: #{tpu_custom_call.1} parent=5 // pred_check_branch
        %785 = sbr.rel (%p783) target = $region76
      $region75: #{tpu_custom_call.1} parent=5 // pred_region
        %s786 = ssub.s32 %s19, 2
        // Predicated region
        $region77: #{tpu_custom_call.1} parent=75 // pred_check
          %p787 = pneg %p305
        $region78: #{tpu_custom_call.1} parent=75 // pred_check_branch
          %789 = sbr.rel (%p787) target = $region80
        $region79: #{tpu_custom_call.1} parent=75 // pred_region
          %s790 = sand.u32 %s290, 1
          %s791 = scalar_lea.sflag [#allocation7], %s790
          %s792 = sand.u32 %s290, 1
          %s793 = smul.addr %s792, 8
          %s794 = scalar_lea.vmem [#allocation6], %s793
          %796 = dma.done %s791, 128
        $region80: #{tpu_custom_call.1} parent=75 // pred_fallthru
          _
      $region76: #{tpu_custom_call.1} parent=5 // pred_fallthru
        _
    $region6: #{tpu_custom_call.1} parent=1 // loop_footer
      %s23 = sadd.s32 1, %s19
    $region7: #{tpu_custom_call.1} parent=1 // loop_footer_branch
      %18 = sbr.rel target = $region3
    $region8: #{tpu_custom_call.1} parent=1 // loop_exit
      _
    %797 = vsyncpa [#allocation7], 1
    %s798 = scalar_lea.sflag [#allocation7], 1
    %799 = vsyncpa %s798, 1

</llo_original>
